<compile_context>
chip_gen: v6e
topology: v6e:2x2x1
jax: 0.10.0
libtpu: 0.0.40
codegen_flags: <defaults>
</compile_context>

<pallas_src>
import functools

import jax
import jax.numpy as jnp
from jax.experimental import pallas as pl
from jax.experimental.pallas import tpu as pltpu

EPS = 1e-5
PAD = 128  # lane width of the single block-diagonal weight slab


def _mlp_kernel(x_ref, w_ref, v_ref, o_ref, *, in_rows):
    """x_ref: [B, F]      unpadded input (F = in_features, multiple of 8 here)
       w_ref: [PAD, PAD]  block-diagonal packed weights (see pack_params)
       v_ref: [8, PAD]    rows: 0=g1, 1=be1, 2=g2, 3=be2, 4=b3, each placed at
                          its layer's column offset; all other lanes are 0
       o_ref: [B, PAD]    logits land in lanes [logit_off, logit_off+C)"""

    def bn_relu(h, g, be):
        # BatchNorm1d, PyTorch training mode: batch mean, *biased* batch var.
        # One-pass stats in f32; zero gamma/beta keep inactive lanes exactly 0.
        mean = jnp.mean(h, axis=0, keepdims=True)
        msq = jnp.mean(h * h, axis=0, keepdims=True)
        var = jnp.maximum(msq - mean * mean, 0.0)
        scale = g * jax.lax.rsqrt(var + EPS)
        shift = be - mean * scale
        return jnp.maximum(h * scale + shift, 0.0)

    g1, be1 = v_ref[0:1, :], v_ref[1:2, :]
    g2, be2 = v_ref[2:3, :], v_ref[3:4, :]
    b3 = v_ref[4:5, :]

    # Layer 1: contract over the real in_features (static, aligned row slice).
    h = bn_relu(
        jnp.dot(x_ref[...], w_ref[0:in_rows, :], preferred_element_type=jnp.float32),
        g1, be1)
    # Layers 2 and 3 reuse the single resident slab; inactive lanes stay 0.
    w = w_ref[...]
    h = bn_relu(jnp.dot(h, w, preferred_element_type=jnp.float32), g2, be2)
    o_ref[...] = jnp.dot(h, w, preferred_element_type=jnp.float32) + b3


def pack_params(params, in_features, complexity, num_classes):
    """Pack all weights into one block-diagonal [PAD, PAD] slab and the BN/bias
    vectors into one [8, PAD] slab (done once, outside the kernel)."""
    h1, h2 = 2 * complexity, complexity
    c1 = in_features            # layer-1 output columns
    c2 = c1 + h1                # layer-2 output columns
    c3 = c2 + h2                # logits columns
    assert c3 + num_classes <= PAD, "feature dims do not fit one 128-lane slab"

    w = jnp.zeros((PAD, PAD), jnp.float32)
    w = w.at[0:in_features, c1:c1 + h1].set(params["w1"])
    w = w.at[c1:c1 + h1, c2:c2 + h2].set(params["w2"])
    w = w.at[c2:c2 + h2, c3:c3 + num_classes].set(params["w3"])

    v = jnp.zeros((8, PAD), jnp.float32)
    v = v.at[0, c1:c1 + h1].set(params["g1"][0])
    v = v.at[1, c1:c1 + h1].set(params["be1"][0])
    v = v.at[2, c2:c2 + h2].set(params["g2"][0])
    v = v.at[3, c2:c2 + h2].set(params["be2"][0])
    v = v.at[4, c3:c3 + num_classes].set(params["b3"][0])
    return w, v, c3


def base_model_forward(x, w_pack, v_pack, logit_off, num_classes):
    """x: [B, in_features] float32 (full batch — BN uses full-batch statistics)."""
    B, F = x.shape
    assert F % 8 == 0, "in_features must be a multiple of 8 for the aligned slice"
    # Whole-batch-in-VMEM design; conservative footprint guard for all TPU gens.
    assert B * (F + 2 * PAD) * 4 < (8 << 20), "batch too large; needs tiled two-pass BN"

    vmem = pl.BlockSpec(memory_space=pltpu.MemorySpace.VMEM)
    out = pl.pallas_call(
        functools.partial(_mlp_kernel, in_rows=F),
        out_shape=jax.ShapeDtypeStruct((B, PAD), jnp.float32),
        in_specs=[vmem, vmem, vmem],
        out_specs=vmem,
    )(x, w_pack, v_pack)
    return out[:, logit_off:logit_off + num_classes]


def init_params(key, in_features, complexity, num_classes):
    """PyTorch-Linear-style init (uniform +/- 1/sqrt(fan_in)); BN gamma=1, beta=0.
    Weights stored as [in, out] (pre-transposed vs. nn.Linear's [out, in])."""
    dims = [(in_features, 2 * complexity),
            (2 * complexity, complexity),
            (complexity, num_classes)]
    params = {}
    for i, (fin, fout) in enumerate(dims, start=1):
        key, kw, kb = jax.random.split(key, 3)
        bound = 1.0 / (fin ** 0.5)
        params[f"w{i}"] = jax.random.uniform(kw, (fin, fout), jnp.float32, -bound, bound)
        params[f"b{i}"] = jax.random.uniform(kb, (1, fout), jnp.float32, -bound, bound)
    for i, (_, fout) in enumerate(dims[:2], start=1):
        params[f"g{i}"] = jnp.ones((1, fout), jnp.float32)
        params[f"be{i}"] = jnp.zeros((1, fout), jnp.float32)
    return params


def _reference_forward(x, p):
    """Plain-JAX reference (two-pass BN stats, all biases included)."""
    def bn(h, g, b):
        m = jnp.mean(h, axis=0, keepdims=True)
        v = jnp.mean((h - m) ** 2, axis=0, keepdims=True)
        return (h - m) / jnp.sqrt(v + EPS) * g + b
    h = jnp.maximum(bn(x @ p["w1"] + p["b1"], p["g1"], p["be1"]), 0.0)
    h = jnp.maximum(bn(h @ p["w2"] + p["b2"], p["g2"], p["be2"]), 0.0)
    return h @ p["w3"] + p["b3"]


if __name__ == "__main__":
    # config = {'architecture_type': 'hard', 'in_features': 32, 'complexity': 16,
    #           'num_classes': 8, 'path': 'None'}
    in_features, complexity, num_classes = 32, 16, 8
    batch = 8

    key = jax.random.PRNGKey(0)
    key, kx = jax.random.split(key)
    x = jax.random.normal(kx, (batch, in_features), dtype=jnp.float32)

    params = init_params(key, in_features, complexity, num_classes)
    w_pack, v_pack, logit_off = pack_params(params, in_features, complexity, num_classes)

    out = base_model_forward(x, w_pack, v_pack, logit_off, num_classes)
    out = jax.block_until_ready(out)

    ref = _reference_forward(x, params)
    assert out.shape == (batch, num_classes)
    assert jnp.allclose(out, ref, atol=1e-4, rtol=1e-4), "mismatch vs reference"

    # TODO(synk): BatchNorm1d running_mean/var (momentum buffers) are not updated;
    # they do not affect this forward output.
    print("KERNEL_OK")
</pallas_src>

<mosaic_0001>
module attributes {stable_mosaic.version = 11 : i64} {
  func.func @_mlp_kernel(%arg0: memref<8x32xf32, #tpu.memory_space<vmem>>, %arg1: memref<128x128xf32, #tpu.memory_space<vmem>>, %arg2: memref<8x128xf32, #tpu.memory_space<vmem>>, %arg3: memref<8x128xf32, #tpu.memory_space<vmem>>) attributes {dimension_semantics = [], scalar_prefetch = 0 : i64, scratch_operands = 0 : i64, tpu.core_type = #tpu.core_type<tc>} {
    %c0 = arith.constant 0 : index
    %c0_0 = arith.constant 0 : index
    %0 = vector.load %arg2[%c0, %c0_0] : memref<8x128xf32, #tpu.memory_space<vmem>>, vector<1x128xf32>
    %c1 = arith.constant 1 : index
    %c0_1 = arith.constant 0 : index
    %1 = vector.load %arg2[%c1, %c0_1] : memref<8x128xf32, #tpu.memory_space<vmem>>, vector<1x128xf32>
    %c2 = arith.constant 2 : index
    %c0_2 = arith.constant 0 : index
    %2 = vector.load %arg2[%c2, %c0_2] : memref<8x128xf32, #tpu.memory_space<vmem>>, vector<1x128xf32>
    %c3 = arith.constant 3 : index
    %c0_3 = arith.constant 0 : index
    %3 = vector.load %arg2[%c3, %c0_3] : memref<8x128xf32, #tpu.memory_space<vmem>>, vector<1x128xf32>
    %c4 = arith.constant 4 : index
    %c0_4 = arith.constant 0 : index
    %4 = vector.load %arg2[%c4, %c0_4] : memref<8x128xf32, #tpu.memory_space<vmem>>, vector<1x128xf32>
    %c0_5 = arith.constant 0 : index
    %c0_6 = arith.constant 0 : index
    %5 = vector.load %arg0[%c0_5, %c0_6] : memref<8x32xf32, #tpu.memory_space<vmem>>, vector<8x32xf32>
    %c0_7 = arith.constant 0 : index
    %c0_8 = arith.constant 0 : index
    %6 = vector.load %arg1[%c0_7, %c0_8] : memref<128x128xf32, #tpu.memory_space<vmem>>, vector<32x128xf32>
    %cst = arith.constant dense<0.000000e+00> : vector<8x128xf32>
    %7 = tpu.matmul %5, %6, %cst {dimension_numbers = #tpu.dot_dimension_numbers<[1], [0], [0], [1], [0, 0, 1, 1], [], []>} : vector<8x32xf32>, vector<32x128xf32>, vector<8x128xf32> -> vector<8x128xf32>
    %cst_9 = arith.constant dense<0.000000e+00> : vector<128xf32>
    %8 = vector.multi_reduction <add>, %7, %cst_9 [0] : vector<8x128xf32> to vector<128xf32>
    %9 = vector.shape_cast %8 : vector<128xf32> to vector<1x128xf32>
    %cst_10 = arith.constant 8.000000e+00 : f32
    %10 = vector.broadcast %cst_10 : f32 to vector<1x128xf32>
    %11 = arith.divf %9, %10 : vector<1x128xf32>
    %12 = arith.mulf %7, %7 : vector<8x128xf32>
    %cst_11 = arith.constant dense<0.000000e+00> : vector<128xf32>
    %13 = vector.multi_reduction <add>, %12, %cst_11 [0] : vector<8x128xf32> to vector<128xf32>
    %14 = vector.shape_cast %13 : vector<128xf32> to vector<1x128xf32>
    %cst_12 = arith.constant 8.000000e+00 : f32
    %15 = vector.broadcast %cst_12 : f32 to vector<1x128xf32>
    %16 = arith.divf %14, %15 : vector<1x128xf32>
    %17 = arith.mulf %11, %11 : vector<1x128xf32>
    %18 = arith.subf %16, %17 : vector<1x128xf32>
    %cst_13 = arith.constant 0.000000e+00 : f32
    %19 = vector.broadcast %cst_13 : f32 to vector<1x128xf32>
    %20 = arith.maximumf %18, %19 : vector<1x128xf32>
    %cst_14 = arith.constant 9.99999974E-6 : f32
    %21 = vector.broadcast %cst_14 : f32 to vector<1x128xf32>
    %22 = arith.addf %20, %21 : vector<1x128xf32>
    %23 = math.rsqrt %22 : vector<1x128xf32>
    %24 = arith.mulf %0, %23 : vector<1x128xf32>
    %25 = arith.mulf %11, %24 : vector<1x128xf32>
    %26 = arith.subf %1, %25 : vector<1x128xf32>
    %27 = vector.broadcast %24 : vector<1x128xf32> to vector<8x128xf32>
    %28 = arith.mulf %7, %27 : vector<8x128xf32>
    %29 = vector.broadcast %26 : vector<1x128xf32> to vector<8x128xf32>
    %30 = arith.addf %28, %29 : vector<8x128xf32>
    %cst_15 = arith.constant 0.000000e+00 : f32
    %31 = vector.broadcast %cst_15 : f32 to vector<8x128xf32>
    %32 = arith.maximumf %30, %31 : vector<8x128xf32>
    %c0_16 = arith.constant 0 : index
    %c0_17 = arith.constant 0 : index
    %33 = vector.load %arg1[%c0_16, %c0_17] : memref<128x128xf32, #tpu.memory_space<vmem>>, vector<128x128xf32>
    %cst_18 = arith.constant dense<0.000000e+00> : vector<8x128xf32>
    %34 = tpu.matmul %32, %33, %cst_18 {dimension_numbers = #tpu.dot_dimension_numbers<[1], [0], [0], [1], [0, 0, 1, 1], [], []>} : vector<8x128xf32>, vector<128x128xf32>, vector<8x128xf32> -> vector<8x128xf32>
    %cst_19 = arith.constant dense<0.000000e+00> : vector<128xf32>
    %35 = vector.multi_reduction <add>, %34, %cst_19 [0] : vector<8x128xf32> to vector<128xf32>
    %36 = vector.shape_cast %35 : vector<128xf32> to vector<1x128xf32>
    %cst_20 = arith.constant 8.000000e+00 : f32
    %37 = vector.broadcast %cst_20 : f32 to vector<1x128xf32>
    %38 = arith.divf %36, %37 : vector<1x128xf32>
    %39 = arith.mulf %34, %34 : vector<8x128xf32>
    %cst_21 = arith.constant dense<0.000000e+00> : vector<128xf32>
    %40 = vector.multi_reduction <add>, %39, %cst_21 [0] : vector<8x128xf32> to vector<128xf32>
    %41 = vector.shape_cast %40 : vector<128xf32> to vector<1x128xf32>
    %cst_22 = arith.constant 8.000000e+00 : f32
    %42 = vector.broadcast %cst_22 : f32 to vector<1x128xf32>
    %43 = arith.divf %41, %42 : vector<1x128xf32>
    %44 = arith.mulf %38, %38 : vector<1x128xf32>
    %45 = arith.subf %43, %44 : vector<1x128xf32>
    %cst_23 = arith.constant 0.000000e+00 : f32
    %46 = vector.broadcast %cst_23 : f32 to vector<1x128xf32>
    %47 = arith.maximumf %45, %46 : vector<1x128xf32>
    %cst_24 = arith.constant 9.99999974E-6 : f32
    %48 = vector.broadcast %cst_24 : f32 to vector<1x128xf32>
    %49 = arith.addf %47, %48 : vector<1x128xf32>
    %50 = math.rsqrt %49 : vector<1x128xf32>
    %51 = arith.mulf %2, %50 : vector<1x128xf32>
    %52 = arith.mulf %38, %51 : vector<1x128xf32>
    %53 = arith.subf %3, %52 : vector<1x128xf32>
    %54 = vector.broadcast %51 : vector<1x128xf32> to vector<8x128xf32>
    %55 = arith.mulf %34, %54 : vector<8x128xf32>
    %56 = vector.broadcast %53 : vector<1x128xf32> to vector<8x128xf32>
    %57 = arith.addf %55, %56 : vector<8x128xf32>
    %cst_25 = arith.constant 0.000000e+00 : f32
    %58 = vector.broadcast %cst_25 : f32 to vector<8x128xf32>
    %59 = arith.maximumf %57, %58 : vector<8x128xf32>
    %cst_26 = arith.constant dense<0.000000e+00> : vector<8x128xf32>
    %60 = tpu.matmul %59, %33, %cst_26 {dimension_numbers = #tpu.dot_dimension_numbers<[1], [0], [0], [1], [0, 0, 1, 1], [], []>} : vector<8x128xf32>, vector<128x128xf32>, vector<8x128xf32> -> vector<8x128xf32>
    %61 = vector.broadcast %4 : vector<1x128xf32> to vector<8x128xf32>
    %62 = arith.addf %60, %61 : vector<8x128xf32>
    %c0_27 = arith.constant 0 : index
    %c0_28 = arith.constant 0 : index
    %63 = vector.load %arg3[%c0_27, %c0_28] : memref<8x128xf32, #tpu.memory_space<vmem>>, vector<8x128xf32>
    tpu.vector_store %arg3[%c0_27, %c0_28], %62 {strides = array<i32>} : memref<8x128xf32, #tpu.memory_space<vmem>>, vector<8x128xf32>,
    return
  }
}

</mosaic_0001>

<llo_original>
// kernel: tpu_custom_call.1
$region0: #{tpu_custom_call.1}
  #allocation0 [shape = 'u32[]', space=smem, size = 0x4, offset = 0x4, fixed_abs, tag = 'smem constant byte address 0x4 - core index']
  #allocation1 [shape = 'u32[144,128]{1,0:T(1,128)}', space=vmem, size = 0x12000, scoped, tag = 'internal scratch']
  %s0 = inlined_call_operand.hbm [shape: f32[8,32], index: 0, kind: input, shape index: {}]
  %s1 = inlined_call_operand.hbm [shape: f32[128,128], index: 1, kind: input, shape index: {}]
  %s2 = inlined_call_operand.hbm [shape: f32[8,128], index: 2, kind: input, shape index: {}]
  %s3 = inlined_call_operand.hbm [shape: f32[8,128], index: 3, kind: output, shape index: {}]
  %s4 = sld [smem:[#allocation0]]
  $region34: #{tpu_custom_call.1} parent=0
    _
  %s6 = ssub.s32 1, %s4
  %s7 = scalar_select 0, %s6, %s4
  $region1: #{tpu_custom_call.1} parent=0
    #allocation2 [shape = 'u8[4096]{0}', space=vmem, size = 0x1000, scoped, tag = 'input window, operand 0, single buffered']
    #allocation3 [shape = 's32[1]{0}', space=sflag, size = 0x4, scoped, tag = 'scoped memory for tpu_custom_call.1']
    #allocation4 [shape = 's32[1]{0}', space=sflag, size = 0x4, scoped, tag = 'scoped memory for tpu_custom_call.1']
    #allocation5 [shape = 'u8[65536]{0}', space=vmem, size = 0x10000, scoped, tag = 'input window, operand 1, single buffered']
    #allocation6 [shape = 's32[1]{0}', space=sflag, size = 0x4, scoped, tag = 'scoped memory for tpu_custom_call.1']
    #allocation7 [shape = 'u8[4096]{0}', space=vmem, size = 0x1000, scoped, tag = 'input window, operand 2, single buffered']
    #allocation8 [shape = 'u8[4096]{0}', space=vmem, size = 0x1000, scoped, tag = 'output window, operand 0, single buffered']
    %8 = vsyncpa [#allocation3], 0
    %9 = vsyncpa [#allocation6], 0
    %10 = vsyncpa [#allocation4], 0
    // Predicated region
    $region2: #{tpu_custom_call.1} parent=1 // pred_check
      _
    $region3: #{tpu_custom_call.1} parent=1 // pred_check_branch
      %12 = sbr.rel (0) target = $region5
    $region4: #{tpu_custom_call.1} parent=1 // pred_region
      %s14 = ssub.s32 128, 128
      %15 = vsyncadd [#allocation3], %s14
      %s17 = sshll.u32 [#allocation2], 4
      %s18 = int_to_ptr.vmem [resolvable:$true] %s17
      %20 = dma.hbm_to_vmem [thread:$0]  %s0, 128, %s18, [#allocation3]
    $region5: #{tpu_custom_call.1} parent=1 // pred_fallthru
      _
    // Predicated region
    $region6: #{tpu_custom_call.1} parent=1 // pred_check
      _
    $region7: #{tpu_custom_call.1} parent=1 // pred_check_branch
      %22 = sbr.rel (0) target = $region9
    $region8: #{tpu_custom_call.1} parent=1 // pred_region
      %s24 = ssub.s32 2048, 2048
      %25 = vsyncadd [#allocation6], %s24
      %s26 = sshll.u32 [#allocation5], 4
      %s27 = int_to_ptr.vmem [resolvable:$true] %s26
      %32 = dma.hbm_to_vmem [thread:$0]  %s1, 2048, %s27, [#allocation6], 128, 128, 8
    $region9: #{tpu_custom_call.1} parent=1 // pred_fallthru
      _
    // Predicated region
    $region10: #{tpu_custom_call.1} parent=1 // pred_check
      _
    $region11: #{tpu_custom_call.1} parent=1 // pred_check_branch
      %34 = sbr.rel (0) target = $region13
    $region12: #{tpu_custom_call.1} parent=1 // pred_region
      %s36 = ssub.s32 128, 128
      %37 = vsyncadd [#allocation6], %s36
      %s39 = sshll.u32 [#allocation7], 4
      %s40 = int_to_ptr.vmem [resolvable:$true] %s39
      %42 = dma.hbm_to_vmem [thread:$0]  %s2, 128, %s40, [#allocation6]
    $region13: #{tpu_custom_call.1} parent=1 // pred_fallthru
      _
    // Predicated region
    $region14: #{tpu_custom_call.1} parent=1 // pred_check
      _
    $region15: #{tpu_custom_call.1} parent=1 // pred_check_branch
      %44 = sbr.rel (0) target = $region17
    $region16: #{tpu_custom_call.1} parent=1 // pred_region
      %45 = dma.done [#allocation3], 128
    $region17: #{tpu_custom_call.1} parent=1 // pred_fallthru
      _
    // Predicated region
    $region18: #{tpu_custom_call.1} parent=1 // pred_check
      _
    $region19: #{tpu_custom_call.1} parent=1 // pred_check_branch
      %47 = sbr.rel (0) target = $region21
    $region20: #{tpu_custom_call.1} parent=1 // pred_region
      %48 = dma.done [#allocation6], 2048
    $region21: #{tpu_custom_call.1} parent=1 // pred_fallthru
      _
    // Predicated region
    $region22: #{tpu_custom_call.1} parent=1 // pred_check
      _
    $region23: #{tpu_custom_call.1} parent=1 // pred_check_branch
      %50 = sbr.rel (0) target = $region25
    $region24: #{tpu_custom_call.1} parent=1 // pred_region
      %51 = dma.done [#allocation6], 128
    $region25: #{tpu_custom_call.1} parent=1 // pred_fallthru
      _
    %v52 = vld [vmem:[#allocation7] sm:$0x1]
    %v53 = vld [vmem:[#allocation7 + $0x1] sm:$0x1]
    %v54 = vld [vmem:[#allocation7 + $0x2] sm:$0x1]
    %v55 = vld [vmem:[#allocation7 + $0x3] sm:$0x1]
    %v56 = vld [vmem:[#allocation7 + $0x4] sm:$0x1]
    %v57 = vld [vmem:[#allocation2] sm:$0xff]
    %v58 = vld [vmem:[#allocation5] sm:$0xff]
    %v59 = vld [vmem:[#allocation5 + $0x8] sm:$0xff]
    %v60 = vld [vmem:[#allocation5 + $0x10] sm:$0xff]
    %v61 = vld [vmem:[#allocation5 + $0x18] sm:$0xff]
    %vm62 = vcmask 261120
    %v64 = vsel %vm62, %v57, 0
    %66 = vmatprep.subr.mxu0 0.0
    %67 = vmatpush1.msra.mxu0 0.0
    %68 = vmatprep.subr.mxu0 0.0
    %69 = vmatpush1.msra.mxu0 0.0
    %70 = vmatprep.subr.mxu0 0.0
    %71 = vmatpush1.msra.mxu0 0.0
    %72 = vmatprep.subr.mxu0 0.0
    %73 = vmatpush1.msra.mxu0 0.0
    %74 = vmatprep.subr.mxu0 0.0
    %75 = vmatpush1.msra.mxu0 0.0
    %76 = vmatprep.subr.mxu0 0.0
    %77 = vmatpush1.msra.mxu0 0.0
    %78 = vmatprep.subr.mxu0 0.0
    %79 = vmatpush1.msra.mxu0 0.0
    %80 = vmatprep.subr.mxu0 0.0
    %81 = vmatpush1.msra.mxu0 0.0
    %82 = vmatprep.subr.mxu0 0.0
    %83 = vmatpush1.msra.mxu0 0.0
    %84 = vmatprep.subr.mxu0 0.0
    %85 = vmatpush1.msra.mxu0 0.0
    %86 = vmatprep.subr.mxu0 0.0
    %87 = vmatpush1.msra.mxu0 0.0
    %88 = vmatprep.subr.mxu0 0.0
    %89 = vmatpush1.msra.mxu0 0.0
    %90 = vmatprep.subr.mxu0 0.0
    %91 = vmatpush1.msra.mxu0 %v61
    %92 = vmatprep.subr.mxu0 0.0
    %93 = vmatpush1.msra.mxu0 %v60
    %94 = vmatprep.subr.mxu0 0.0
    %95 = vmatpush1.msra.mxu0 %v59
    %96 = vmatprep.subr.mxu0 0.0
    %97 = vmatpush1.msra.mxu0 %v58
    %98 = vmatprep.subr.mxu0 0.0
    %99 = vmatpush2.msra.mxu0 0.0
    %100 = vmatprep.subr.mxu0 0.0
    %101 = vmatpush2.msra.mxu0 0.0
    %102 = vmatprep.subr.mxu0 0.0
    %103 = vmatpush2.msra.mxu0 0.0
    %104 = vmatprep.subr.mxu0 0.0
    %105 = vmatpush2.msra.mxu0 0.0
    %106 = vmatprep.subr.mxu0 0.0
    %107 = vmatpush2.msra.mxu0 0.0
    %108 = vmatprep.subr.mxu0 0.0
    %109 = vmatpush2.msra.mxu0 0.0
    %110 = vmatprep.subr.mxu0 0.0
    %111 = vmatpush2.msra.mxu0 0.0
    %112 = vmatprep.subr.mxu0 0.0
    %113 = vmatpush2.msra.mxu0 0.0
    %114 = vmatprep.subr.mxu0 0.0
    %115 = vmatpush2.msra.mxu0 0.0
    %116 = vmatprep.subr.mxu0 0.0
    %117 = vmatpush2.msra.mxu0 0.0
    %118 = vmatprep.subr.mxu0 0.0
    %119 = vmatpush2.msra.mxu0 0.0
    %120 = vmatprep.subr.mxu0 0.0
    %121 = vmatpush2.msra.mxu0 0.0
    %122 = vmatprep.subr.mxu0 0.0
    %123 = vmatpush2.msra.mxu0 0.0
    %124 = vmatprep.subr.mxu0 0.0
    %125 = vmatpush2.msra.mxu0 0.0
    %126 = vmatprep.subr.mxu0 0.0
    %127 = vmatpush2.msra.mxu0 0.0
    %128 = vmatprep.subr.mxu0 0.0
    %129 = vmatpush2.msra.mxu0 0.0
    %130 = vmatprep.mubr.f32.mxu0 0.0
    %131 = vmatmul.mubr.f32.gmra.mxu0 %v64
    %v132 = vpop.f32.mrf.mxu0
    %v133 = vadd.f32 0.0, %v132
    %v134 = vpop.f32.mrf.mxu0
    %135 = vdwg.mxu0
    %v136 = vrot.slane %v133, 4
    %v137 = vadd.f32 %v133, %v136
    %v138 = vrot.slane %v137, 2
    %v139 = vadd.f32 %v137, %v138
    %v140 = vrot.slane %v139, 1
    %v141 = vadd.f32 %v139, %v140
    %v142 = vrcp.pop 8.0
    %v143 = vmul.f32 %v141, %v142
    %v144 = vmul.f32 %v133, %v133
    %v145 = vrot.slane %v144, 4
    %v146 = vadd.f32 %v144, %v145
    %v147 = vrot.slane %v146, 2
    %v148 = vadd.f32 %v146, %v147
    %v149 = vrot.slane %v148, 1
    %v150 = vadd.f32 %v148, %v149
    %v151 = vmul.f32 %v150, %v142
    %v152 = vmul.f32 %v143, %v143
    %v153 = vsub.f32 %v151, %v152
    %v154 = vmax.f32 %v153, 0.0
    %v155 = vadd.f32 %v154, 1e-05
    %v156 = vrsqrt.pop %v155
    %v157 = vmul.f32 %v52, %v156
    %v158 = vmul.f32 %v143, %v157
    %v159 = vsub.f32 %v53, %v158
    %v160 = vlaneseq
    %v161 = vshrl.u32 %v160, 7
    %v162 = vsub.s32 0, %v161
    %v163 = vrot.slane %v157, %v162
    %v164 = vmul.f32 %v133, %v163
    %v165 = vlaneseq
    %v166 = vshrl.u32 %v165, 7
    %v167 = vsub.s32 0, %v166
    %v168 = vrot.slane %v159, %v167
    %v169 = vadd.f32 %v164, %v168
    %v170 = vmax.f32 %v169, 0.0
    %v171 = vld [vmem:[#allocation5] sm:$0xff]
    %v172 = vld [vmem:[#allocation5 + $0x8] sm:$0xff]
    %v173 = vld [vmem:[#allocation5 + $0x10] sm:$0xff]
    %v174 = vld [vmem:[#allocation5 + $0x18] sm:$0xff]
    %v175 = vld [vmem:[#allocation5 + $0x20] sm:$0xff]
    %v176 = vld [vmem:[#allocation5 + $0x28] sm:$0xff]
    %v177 = vld [vmem:[#allocation5 + $0x30] sm:$0xff]
    %v178 = vld [vmem:[#allocation5 + $0x38] sm:$0xff]
    %v179 = vld [vmem:[#allocation5 + $0x40] sm:$0xff]
    %v180 = vld [vmem:[#allocation5 + $0x48] sm:$0xff]
    %v181 = vld [vmem:[#allocation5 + $0x50] sm:$0xff]
    %v182 = vld [vmem:[#allocation5 + $0x58] sm:$0xff]
    %v183 = vld [vmem:[#allocation5 + $0x60] sm:$0xff]
    %v184 = vld [vmem:[#allocation5 + $0x68] sm:$0xff]
    %v185 = vld [vmem:[#allocation5 + $0x70] sm:$0xff]
    %v186 = vld [vmem:[#allocation5 + $0x78] sm:$0xff]
    %187 = vmatprep.subr.mxu0 0.0
    %188 = vmatpush1.msra.mxu0 %v186
    %189 = vmatprep.subr.mxu0 0.0
    %190 = vmatpush1.msra.mxu0 %v185
    %191 = vmatprep.subr.mxu0 0.0
    %192 = vmatpush1.msra.mxu0 %v184
    %193 = vmatprep.subr.mxu0 0.0
    %194 = vmatpush1.msra.mxu0 %v183
    %195 = vmatprep.subr.mxu0 0.0
    %196 = vmatpush1.msra.mxu0 %v182
    %197 = vmatprep.subr.mxu0 0.0
    %198 = vmatpush1.msra.mxu0 %v181
    %199 = vmatprep.subr.mxu0 0.0
    %200 = vmatpush1.msra.mxu0 %v180
    %201 = vmatprep.subr.mxu0 0.0
    %202 = vmatpush1.msra.mxu0 %v179
    %203 = vmatprep.subr.mxu0 0.0
    %204 = vmatpush1.msra.mxu0 %v178
    %205 = vmatprep.subr.mxu0 0.0
    %206 = vmatpush1.msra.mxu0 %v177
    %207 = vmatprep.subr.mxu0 0.0
    %208 = vmatpush1.msra.mxu0 %v176
    %209 = vmatprep.subr.mxu0 0.0
    %210 = vmatpush1.msra.mxu0 %v175
    %211 = vmatprep.subr.mxu0 0.0
    %212 = vmatpush1.msra.mxu0 %v174
    %213 = vmatprep.subr.mxu0 0.0
    %214 = vmatpush1.msra.mxu0 %v173
    %215 = vmatprep.subr.mxu0 0.0
    %216 = vmatpush1.msra.mxu0 %v172
    %217 = vmatprep.subr.mxu0 0.0
    %218 = vmatpush1.msra.mxu0 %v171
    %219 = vmatprep.subr.mxu0 0.0
    %220 = vmatpush2.msra.mxu0 0.0
    %221 = vmatprep.subr.mxu0 0.0
    %222 = vmatpush2.msra.mxu0 0.0
    %223 = vmatprep.subr.mxu0 0.0
    %224 = vmatpush2.msra.mxu0 0.0
    %225 = vmatprep.subr.mxu0 0.0
    %226 = vmatpush2.msra.mxu0 0.0
    %227 = vmatprep.subr.mxu0 0.0
    %228 = vmatpush2.msra.mxu0 0.0
    %229 = vmatprep.subr.mxu0 0.0
    %230 = vmatpush2.msra.mxu0 0.0
    %231 = vmatprep.subr.mxu0 0.0
    %232 = vmatpush2.msra.mxu0 0.0
    %233 = vmatprep.subr.mxu0 0.0
    %234 = vmatpush2.msra.mxu0 0.0
    %235 = vmatprep.subr.mxu0 0.0
    %236 = vmatpush2.msra.mxu0 0.0
    %237 = vmatprep.subr.mxu0 0.0
    %238 = vmatpush2.msra.mxu0 0.0
    %239 = vmatprep.subr.mxu0 0.0
    %240 = vmatpush2.msra.mxu0 0.0
    %241 = vmatprep.subr.mxu0 0.0
    %242 = vmatpush2.msra.mxu0 0.0
    %243 = vmatprep.subr.mxu0 0.0
    %244 = vmatpush2.msra.mxu0 0.0
    %245 = vmatprep.subr.mxu0 0.0
    %246 = vmatpush2.msra.mxu0 0.0
    %247 = vmatprep.subr.mxu0 0.0
    %248 = vmatpush2.msra.mxu0 0.0
    %249 = vmatprep.subr.mxu0 0.0
    %250 = vmatpush2.msra.mxu0 0.0
    %251 = vmatprep.mubr.f32.mxu0 0.0
    %252 = vmatmul.mubr.f32.gmra.mxu0 %v170
    %v253 = vpop.f32.mrf.mxu0
    %v254 = vadd.f32 0.0, %v253
    %v255 = vpop.f32.mrf.mxu0
    %256 = vdwg.mxu0
    %v257 = vrot.slane %v254, 4
    %v258 = vadd.f32 %v254, %v257
    %v259 = vrot.slane %v258, 2
    %v260 = vadd.f32 %v258, %v259
    %v261 = vrot.slane %v260, 1
    %v262 = vadd.f32 %v260, %v261
    %v263 = vmul.f32 %v262, %v142
    %v264 = vmul.f32 %v254, %v254
    %v265 = vrot.slane %v264, 4
    %v266 = vadd.f32 %v264, %v265
    %v267 = vrot.slane %v266, 2
    %v268 = vadd.f32 %v266, %v267
    %v269 = vrot.slane %v268, 1
    %v270 = vadd.f32 %v268, %v269
    %v271 = vmul.f32 %v270, %v142
    %v272 = vmul.f32 %v263, %v263
    %v273 = vsub.f32 %v271, %v272
    %v274 = vmax.f32 %v273, 0.0
    %v275 = vadd.f32 %v274, 1e-05
    %v276 = vrsqrt.pop %v275
    %v277 = vmul.f32 %v54, %v276
    %v278 = vmul.f32 %v263, %v277
    %v279 = vsub.f32 %v55, %v278
    %v280 = vlaneseq
    %v281 = vshrl.u32 %v280, 7
    %v282 = vsub.s32 0, %v281
    %v283 = vrot.slane %v277, %v282
    %v284 = vmul.f32 %v254, %v283
    %v285 = vlaneseq
    %v286 = vshrl.u32 %v285, 7
    %v287 = vsub.s32 0, %v286
    %v288 = vrot.slane %v279, %v287
    %v289 = vadd.f32 %v284, %v288
    %v290 = vmax.f32 %v289, 0.0
    %v291 = vlaneseq
    %v292 = vshrl.u32 %v291, 7
    %v293 = vsub.s32 0, %v292
    %v294 = vrot.slane %v56, %v293
    %295 = vmatprep.subr.mxu0 0.0
    %296 = vmatpush1.msra.mxu0 %v186
    %297 = vmatprep.subr.mxu0 0.0
    %298 = vmatpush1.msra.mxu0 %v185
    %299 = vmatprep.subr.mxu0 0.0
    %300 = vmatpush1.msra.mxu0 %v184
    %301 = vmatprep.subr.mxu0 0.0
    %302 = vmatpush1.msra.mxu0 %v183
    %303 = vmatprep.subr.mxu0 0.0
    %304 = vmatpush1.msra.mxu0 %v182
    %305 = vmatprep.subr.mxu0 0.0
    %306 = vmatpush1.msra.mxu0 %v181
    %307 = vmatprep.subr.mxu0 0.0
    %308 = vmatpush1.msra.mxu0 %v180
    %309 = vmatprep.subr.mxu0 0.0
    %310 = vmatpush1.msra.mxu0 %v179
    %311 = vmatprep.subr.mxu0 0.0
    %312 = vmatpush1.msra.mxu0 %v178
    %313 = vmatprep.subr.mxu0 0.0
    %314 = vmatpush1.msra.mxu0 %v177
    %315 = vmatprep.subr.mxu0 0.0
    %316 = vmatpush1.msra.mxu0 %v176
    %317 = vmatprep.subr.mxu0 0.0
    %318 = vmatpush1.msra.mxu0 %v175
    %319 = vmatprep.subr.mxu0 0.0
    %320 = vmatpush1.msra.mxu0 %v174
    %321 = vmatprep.subr.mxu0 0.0
    %322 = vmatpush1.msra.mxu0 %v173
    %323 = vmatprep.subr.mxu0 0.0
    %324 = vmatpush1.msra.mxu0 %v172
    %325 = vmatprep.subr.mxu0 0.0
    %326 = vmatpush1.msra.mxu0 %v171
    %327 = vmatprep.subr.mxu0 0.0
    %328 = vmatpush2.msra.mxu0 0.0
    %329 = vmatprep.subr.mxu0 0.0
    %330 = vmatpush2.msra.mxu0 0.0
    %331 = vmatprep.subr.mxu0 0.0
    %332 = vmatpush2.msra.mxu0 0.0
    %333 = vmatprep.subr.mxu0 0.0
    %334 = vmatpush2.msra.mxu0 0.0
    %335 = vmatprep.subr.mxu0 0.0
    %336 = vmatpush2.msra.mxu0 0.0
    %337 = vmatprep.subr.mxu0 0.0
    %338 = vmatpush2.msra.mxu0 0.0
    %339 = vmatprep.subr.mxu0 0.0
    %340 = vmatpush2.msra.mxu0 0.0
    %341 = vmatprep.subr.mxu0 0.0
    %342 = vmatpush2.msra.mxu0 0.0
    %343 = vmatprep.subr.mxu0 0.0
    %344 = vmatpush2.msra.mxu0 0.0
    %345 = vmatprep.subr.mxu0 0.0
    %346 = vmatpush2.msra.mxu0 0.0
    %347 = vmatprep.subr.mxu0 0.0
    %348 = vmatpush2.msra.mxu0 0.0
    %349 = vmatprep.subr.mxu0 0.0
    %350 = vmatpush2.msra.mxu0 0.0
    %351 = vmatprep.subr.mxu0 0.0
    %352 = vmatpush2.msra.mxu0 0.0
    %353 = vmatprep.subr.mxu0 0.0
    %354 = vmatpush2.msra.mxu0 0.0
    %355 = vmatprep.subr.mxu0 0.0
    %356 = vmatpush2.msra.mxu0 0.0
    %357 = vmatprep.subr.mxu0 0.0
    %358 = vmatpush2.msra.mxu0 0.0
    %359 = vmatprep.mubr.f32.mxu0 0.0
    %360 = vmatmul.mubr.f32.gmra.mxu0 %v290
    %v361 = vpop.f32.mrf.mxu0
    %v362 = vadd.f32 %v294, %v361
    %v363 = vpop.f32.mrf.mxu0
    %364 = vdwg.mxu0
    %365 = vst [vmem:[#allocation8] sm:$0xff] %v362
    // Predicated region
    $region26: #{tpu_custom_call.1} parent=1 // pred_check
      _
    $region27: #{tpu_custom_call.1} parent=1 // pred_check_branch
      %367 = sbr.rel (0) target = $region29
    $region28: #{tpu_custom_call.1} parent=1 // pred_region
      %s369 = ssub.s32 128, 128
      %370 = vsyncadd [#allocation4], %s369
      %s372 = sshll.u32 [#allocation8], 4
      %s373 = int_to_ptr.vmem [resolvable:$true] %s372
      %375 = dma.vmem_to_hbm [thread:$0]  %s373, 128, %s3, [#allocation4]
    $region29: #{tpu_custom_call.1} parent=1 // pred_fallthru
      _
    // Predicated region
    $region30: #{tpu_custom_call.1} parent=1 // pred_check
      _
    $region31: #{tpu_custom_call.1} parent=1 // pred_check_branch
      %377 = sbr.rel (0) target = $region33
    $region32: #{tpu_custom_call.1} parent=1 // pred_region
      %378 = dma.done [#allocation4], 128
    $region33: #{tpu_custom_call.1} parent=1 // pred_fallthru
      _
    %379 = vsyncpa [#allocation3], 1
    %380 = vsyncpa [#allocation6], 1
    %381 = vsyncpa [#allocation4], 1

</llo_original>
